<compile_context>
chip_gen: v7x
topology: tpu7x:2x2x1
jax: 0.10.0
libtpu: 0.0.40
codegen_flags: <defaults>
</compile_context>

<pallas_src>
import functools

import jax
import jax.numpy as jnp
from jax.experimental import pallas as pl
from jax.experimental.pallas import tpu as pltpu


def _round_up(x, m):
    return (x + m - 1) // m * m


# ----------------------------- kernels -----------------------------


def _linear_fast_kernel(x_ref, w_ref, b_ref, o_ref):
    """o_tile = bf16(x_tile_f32) @ W_resident + b.  One dot per M tile."""
    x_bf16 = x_ref[...].astype(jnp.bfloat16)
    o_ref[...] = (
        jnp.dot(x_bf16, w_ref[...], preferred_element_type=jnp.float32)
        + b_ref[...]
    )


def _linear_tiled_kernel(x_ref, w_ref, b_ref, o_ref):
    """Accumulate into the kk-invariant f32 output block; bias at kk == 0."""
    kk = pl.program_id(2)

    @pl.when(kk == 0)
    def _():
        # Fold the bias into the accumulator init (no extra full-output pass).
        o_ref[...] = jnp.broadcast_to(b_ref[...], o_ref.shape)

    x_bf16 = x_ref[...].astype(jnp.bfloat16)
    o_ref[...] += jnp.dot(x_bf16, w_ref[...],
                          preferred_element_type=jnp.float32)


# --------------------------- host wrappers ---------------------------


def _prepare_params(w, b, *, fast_path_budget_bytes=24 << 20):
    """One-time (off the hot path) weight/bias padding, bf16 cast, tile choice."""
    d, k = w.shape
    b2 = jnp.reshape(b, (1, k)).astype(jnp.float32)  # accept 1-D or (1, K) bias

    k_pad = _round_up(k, 128)
    # 256-wide N tiles only when K genuinely supports it (v6e/v7x MXU width);
    # a tiny K stays at one 128-lane tile.
    tn = 256 if (k_pad >= 256 and k_pad % 256 == 0) else 128
    tk = 512 if d > 512 else _round_up(max(d, 1), 128)
    d_pad = _round_up(d, tk)
    tm_max = 256

    w_p = jnp.pad(w.astype(jnp.bfloat16), ((0, d_pad - d), (0, k_pad - k)))
    b_p = jnp.pad(b2, ((0, 0), (0, k_pad - k)))

    # Fast path: whole padded W resident + double-buffered x(f32)/out(f32).
    fast_bytes = (d_pad * k_pad * 2
                  + 2 * tm_max * d_pad * 4
                  + 2 * tm_max * k_pad * 4
                  + k_pad * 4)
    fast_path = fast_bytes <= fast_path_budget_bytes

    if fast_path:
        need = fast_bytes
    else:
        need = (2 * tm_max * tk * 4      # x f32 tiles, double-buffered
                + 2 * tk * tn * 2        # w bf16 tiles, double-buffered
                + tm_max * tn * 4        # resident f32 output block
                + tn * 4)
    # Explicit budget; cap at 48 MiB so the same config is safe on v7x (64 MiB
    # physical VMEM) as well as v5e/v6e (128 MiB).
    vmem_limit = int(min(48 << 20, max(32 << 20, int(need * 1.5))))

    cfg = dict(tm_max=tm_max, tn=tn, tk=tk, fast_path=fast_path,
               vmem_limit_bytes=vmem_limit)
    return w_p, b_p, cfg


def _linear_forward(x_flat, w_p, b_p, *, k, tm_max, tn, tk, fast_path,
                    vmem_limit_bytes):
    """y[:, :k] = x_flat @ W + b using pre-padded bf16 W and f32 bias."""
    n, d = x_flat.shape
    d_pad, k_pad = w_p.shape
    assert d <= d_pad, "weight/input feature mismatch"

    # Adaptive M tile: don't pad batch 2 up to 128 rows of zeros.
    tm = min(tm_max, _round_up(n, 16))
    m_pad = _round_up(n, tm)

    # Only x is padded per call (f32, no cast here — the kernel casts on-VPU).
    x_p = jnp.pad(x_flat, ((0, m_pad - n), (0, d_pad - d)))

    if fast_path:
        # W fits VMEM: collapse the N and reduction axes; one dot per M tile.
        out_p = pl.pallas_call(
            _linear_fast_kernel,
            out_shape=jax.ShapeDtypeStruct((m_pad, k_pad), jnp.float32),
            grid=(m_pad // tm,),
            in_specs=[
                pl.BlockSpec((tm, d_pad), lambda i: (i, 0)),      # x (f32)
                pl.BlockSpec((d_pad, k_pad), lambda i: (0, 0)),   # W (bf16)
                pl.BlockSpec((1, k_pad), lambda i: (0, 0)),       # bias (f32)
            ],
            out_specs=pl.BlockSpec((tm, k_pad), lambda i: (i, 0)),
            compiler_params=pltpu.CompilerParams(
                dimension_semantics=("parallel",),
                vmem_limit_bytes=vmem_limit_bytes),
        )(x_p, w_p, b_p)
    else:
        # General tiled reduction; f32 output block accumulates in place.
        grid = (m_pad // tm, k_pad // tn, d_pad // tk)
        out_p = pl.pallas_call(
            _linear_tiled_kernel,
            out_shape=jax.ShapeDtypeStruct((m_pad, k_pad), jnp.float32),
            grid=grid,
            in_specs=[
                pl.BlockSpec((tm, tk), lambda i, j, kk: (i, kk)),   # x (f32)
                pl.BlockSpec((tk, tn), lambda i, j, kk: (kk, j)),   # W (bf16)
                pl.BlockSpec((1, tn), lambda i, j, kk: (0, j)),     # bias
            ],
            out_specs=pl.BlockSpec((tm, tn), lambda i, j, kk: (i, j)),
            compiler_params=pltpu.CompilerParams(
                dimension_semantics=("parallel", "parallel", "arbitrary"),
                vmem_limit_bytes=vmem_limit_bytes),
        )(x_p, w_p, b_p)

    return out_p[:n, :k]


def _adapter_forward(x_nchw, w_p, b_p, *, k, steps, tm_max, tn, tk, fast_path,
                     vmem_limit_bytes):
    """BaseAdapter.forward: steps x forward_and_adapt(x), return last outputs.

    forward_and_adapt is pure here (the adaptation step is abstract in the
    reference), so every iteration produces identical outputs; the model
    forward therefore runs exactly once instead of relying on custom-call CSE.
    """
    del steps  # semantics preserved: no state mutates between steps
    n = x_nchw.shape[0]
    x_flat = x_nchw.reshape(n, -1)  # row-major flatten == torch x.view(N, -1)
    return _linear_forward(x_flat, w_p, b_p, k=k, tm_max=tm_max, tn=tn, tk=tk,
                           fast_path=fast_path,
                           vmem_limit_bytes=vmem_limit_bytes)


class BaseAdapterPallas:
    """JAX/Pallas analogue of BaseAdapter with a concrete linear model."""

    def __init__(self, steps, in_features, num_classes, key):
        assert steps > 0, "requires >= 1 step(s) to forward and update"
        self.steps = steps
        kw, kb = jax.random.split(key)
        # Deterministic parameter init (synthetic weights, not a checkpoint).
        self.w = jax.random.normal(kw, (in_features, num_classes),
                                   jnp.float32) * 0.02
        self.b = jax.random.normal(kb, (num_classes,), jnp.float32) * 0.02
        self.params, self.param_names = self.collect_params()
        self.optimizer = None if len(self.param_names) == 0 else object()

        # Hoisted out of the hot path: pad + cast weights/bias once, pick tiles.
        self.w_p, self.b_p, cfg = _prepare_params(self.w, self.b)
        self._fwd = jax.jit(functools.partial(
            _adapter_forward, k=num_classes, steps=steps, **cfg))

    def collect_params(self):
        return [self.w, self.b], ["classifier.weight", "classifier.bias"]

    def forward_and_adapt(self, x, label=None):
        # TODO(synk): gradient/optimizer adaptation is abstract
        # (NotImplementedError) in the reference; only the forward is realized.
        return self._fwd(x, self.w_p, self.b_p)

    def forward(self, x, label=None):
        return self._fwd(x, self.w_p, self.b_p)

    __call__ = forward


if __name__ == "__main__":
    key = jax.random.PRNGKey(0)
    k_x, k_p = jax.random.split(key)

    # Small NCHW input consistent with an image-classification adapter.
    N, C, H, W = 2, 4, 16, 16
    NUM_CLASSES = 8
    x = jax.random.normal(k_x, (N, C, H, W), jnp.float32)

    adapter = BaseAdapterPallas(
        steps=2, in_features=C * H * W, num_classes=NUM_CLASSES, key=k_p
    )

    out = adapter(x)
    out = jax.block_until_ready(out)
    assert out.shape == (N, NUM_CLASSES)

    # Sanity checks against plain-JAX references.
    x_flat = x.reshape(N, -1)
    b_row = adapter.b.reshape(1, -1)
    # Same-precision reference (bf16 operands, f32 accumulation).
    ref_bf16 = jnp.dot(
        x_flat.astype(jnp.bfloat16), adapter.w.astype(jnp.bfloat16),
        preferred_element_type=jnp.float32) + b_row
    assert jnp.allclose(out, ref_bf16, atol=1e-3, rtol=1e-3)
    # Loose check against the full-f32 reference (bf16 rounding of operands).
    ref_f32 = x_flat @ adapter.w + b_row
    assert jnp.allclose(out, ref_f32, atol=5e-2)

    print("KERNEL_OK")
</pallas_src>

<mosaic_0001>
module attributes {stable_mosaic.version = 11 : i64} {
  func.func @_linear_fast_kernel(%arg0: i32, %arg1: memref<16x1024xf32, #tpu.memory_space<vmem>>, %arg2: memref<1024x128xbf16, #tpu.memory_space<vmem>>, %arg3: memref<1x128xf32, #tpu.memory_space<vmem>>, %arg4: memref<16x128xf32, #tpu.memory_space<vmem>>) attributes {dimension_semantics = [#tpu.dimension_semantics<parallel>], iteration_bounds = array<i64: 1>, scalar_prefetch = 0 : i64, scratch_operands = 0 : i64, tpu.core_type = #tpu.core_type<tc>, window_params = [{transform_indices = @transform_0, window_bounds = array<i64: 16, 1024>}, {pipeline_mode = #tpu.pipeline_mode<synchronous>, transform_indices = @transform_1, window_bounds = array<i64: 1024, 128>}, {pipeline_mode = #tpu.pipeline_mode<synchronous>, transform_indices = @transform_2, window_bounds = array<i64: 1, 128>}, {transform_indices = @transform_3, window_bounds = array<i64: 16, 128>}]} {
    %c0 = arith.constant 0 : index
    %c0_0 = arith.constant 0 : index
    %0 = vector.load %arg1[%c0, %c0_0] : memref<16x1024xf32, #tpu.memory_space<vmem>>, vector<16x1024xf32>
    %1 = arith.truncf %0 : vector<16x1024xf32> to vector<16x1024xbf16>
    %c0_1 = arith.constant 0 : index
    %c0_2 = arith.constant 0 : index
    %2 = vector.load %arg2[%c0_1, %c0_2] : memref<1024x128xbf16, #tpu.memory_space<vmem>>, vector<1024x128xbf16>
    %cst = arith.constant dense<0.000000e+00> : vector<16x128xf32>
    %3 = tpu.matmul %1, %2, %cst {dimension_numbers = #tpu.dot_dimension_numbers<[1], [0], [0], [1], [0, 0, 1, 1], [], []>} : vector<16x1024xbf16>, vector<1024x128xbf16>, vector<16x128xf32> -> vector<16x128xf32>
    %c0_3 = arith.constant 0 : index
    %c0_4 = arith.constant 0 : index
    %4 = vector.load %arg3[%c0_3, %c0_4] : memref<1x128xf32, #tpu.memory_space<vmem>>, vector<1x128xf32>
    %5 = vector.broadcast %4 : vector<1x128xf32> to vector<16x128xf32>
    %6 = arith.addf %3, %5 : vector<16x128xf32>
    %c0_5 = arith.constant 0 : index
    %c0_6 = arith.constant 0 : index
    %7 = vector.load %arg4[%c0_5, %c0_6] : memref<16x128xf32, #tpu.memory_space<vmem>>, vector<16x128xf32>
    tpu.vector_store %arg4[%c0_5, %c0_6], %6 {strides = array<i32>} : memref<16x128xf32, #tpu.memory_space<vmem>>, vector<16x128xf32>,
    return
  }
  func.func @transform_0(%arg0: i32) -> (i32, i32) {
    %c0_i32 = arith.constant 0 : i32
    %c0_i32_0 = arith.constant 0 : i32
    return %arg0, %c0_i32 : i32, i32
  }
  func.func @transform_1(%arg0: i32) -> (i32, i32) {
    %c0_i32 = arith.constant 0 : i32
    %c0_i32_0 = arith.constant 0 : i32
    %c0_i32_1 = arith.constant 0 : i32
    return %c0_i32, %c0_i32_0 : i32, i32
  }
  func.func @transform_2(%arg0: i32) -> (i32, i32) {
    %c0_i32 = arith.constant 0 : i32
    %c0_i32_0 = arith.constant 0 : i32
    %c0_i32_1 = arith.constant 0 : i32
    return %c0_i32, %c0_i32_0 : i32, i32
  }
  func.func @transform_3(%arg0: i32) -> (i32, i32) {
    %c0_i32 = arith.constant 0 : i32
    %c0_i32_0 = arith.constant 0 : i32
    return %arg0, %c0_i32 : i32, i32
  }
}

</mosaic_0001>

<llo_original>
// kernel: _adapter_forward.1
$region0: #{_adapter_forward.1}
  #allocation0 [shape = 'u32[]', space=smem, size = 0x4, offset = 0x4, fixed_abs, tag = 'smem constant byte address 0x4 - core index']
  #allocation1 [shape = 'u32[144,128]{1,0:T(1,128)}', space=vmem, size = 0x12000, scoped, tag = 'internal scratch']
  %s0 = inlined_call_operand.vmem [shape: f32[16,1024], index: 0, kind: input, shape index: {}]
  %s1 = inlined_call_operand.hbm [shape: bf16[1024,128], index: 1, kind: input, shape index: {}]
  %s2 = inlined_call_operand.vmem [shape: f32[1,128], index: 2, kind: input, shape index: {}]
  %s3 = inlined_call_operand.vmem [shape: f32[16,128], index: 3, kind: output, shape index: {}]
  %s4 = sld [smem:[#allocation0]]
  $region26: #{_adapter_forward.1} parent=0
    _
  %s6 = ssub.s32 1, %s4
  %s7 = scalar_select 0, %s6, %s4
  $region1: #{_adapter_forward.1} parent=0
    #allocation2 [shape = 'u8[262144]{0}', space=vmem, size = 0x40000, scoped, tag = 'input window, operand 1, single buffered']
    #allocation3 [shape = 's32[1]{0}', space=sflag, size = 0x4, scoped, tag = 'scoped memory for _adapter_forward.1']
    %8 = vsyncpa [#allocation3], 0
    // Predicated region
    $region2: #{_adapter_forward.1} parent=1 // pred_check
      _
    $region3: #{_adapter_forward.1} parent=1 // pred_check_branch
      %10 = sbr.rel (0) target = $region5
    $region4: #{_adapter_forward.1} parent=1 // pred_region
      _
    $region5: #{_adapter_forward.1} parent=1 // pred_fallthru
      _
    // Predicated region
    $region6: #{_adapter_forward.1} parent=1 // pred_check
      _
    $region7: #{_adapter_forward.1} parent=1 // pred_check_branch
      %12 = sbr.rel (0) target = $region9
    $region8: #{_adapter_forward.1} parent=1 // pred_region
      %s14 = ssub.s32 8192, 8192
      %15 = vsyncadd [#allocation3], %s14
      %s16 = sshll.u32 [#allocation2], 4
      %s17 = int_to_ptr.vmem [resolvable:$true] %s16
      %22 = dma.hbm_to_vmem [thread:$0]  %s1, 8192, %s17, [#allocation3], 64, 64, 4
    $region9: #{_adapter_forward.1} parent=1 // pred_fallthru
      _
    // Predicated region
    $region10: #{_adapter_forward.1} parent=1 // pred_check
      _
    $region11: #{_adapter_forward.1} parent=1 // pred_check_branch
      %24 = sbr.rel (0) target = $region13
    $region12: #{_adapter_forward.1} parent=1 // pred_region
      _
    $region13: #{_adapter_forward.1} parent=1 // pred_fallthru
      _
    // Predicated region
    $region14: #{_adapter_forward.1} parent=1 // pred_check
      _
    $region15: #{_adapter_forward.1} parent=1 // pred_check_branch
      %26 = sbr.rel (0) target = $region17
    $region16: #{_adapter_forward.1} parent=1 // pred_region
      %27 = dma.done [#allocation3], 8192
    $region17: #{_adapter_forward.1} parent=1 // pred_fallthru
      _
    %v29 = vld [vmem:[%s0] sm:$0xff]
    %v30 = vld [vmem:[%s0 + $0x8] sm:$0xff]
    %v31 = vld [vmem:[%s0 + $0x10] sm:$0xff]
    %v32 = vld [vmem:[%s0 + $0x18] sm:$0xff]
    %v33 = vld [vmem:[%s0 + $0x20] sm:$0xff]
    %v34 = vld [vmem:[%s0 + $0x28] sm:$0xff]
    %v35 = vld [vmem:[%s0 + $0x30] sm:$0xff]
    %v36 = vld [vmem:[%s0 + $0x38] sm:$0xff]
    %v37 = vld [vmem:[%s0 + $0x40] sm:$0xff]
    %v38 = vld [vmem:[%s0 + $0x48] sm:$0xff]
    %v39 = vld [vmem:[%s0 + $0x50] sm:$0xff]
    %v40 = vld [vmem:[%s0 + $0x58] sm:$0xff]
    %v41 = vld [vmem:[%s0 + $0x60] sm:$0xff]
    %v42 = vld [vmem:[%s0 + $0x68] sm:$0xff]
    %v43 = vld [vmem:[%s0 + $0x70] sm:$0xff]
    %v44 = vld [vmem:[%s0 + $0x78] sm:$0xff]
    %v45 = vpack.c.bf16 %v37, %v29
    %v46 = vpack.c.bf16 %v38, %v30
    %v47 = vpack.c.bf16 %v39, %v31
    %v48 = vpack.c.bf16 %v40, %v32
    %v49 = vpack.c.bf16 %v41, %v33
    %v50 = vpack.c.bf16 %v42, %v34
    %v51 = vpack.c.bf16 %v43, %v35
    %v52 = vpack.c.bf16 %v44, %v36
    %v53 = vld [vmem:[#allocation2] sm:$0xf]
    %v54 = vld [vmem:[#allocation2 + $0x4] sm:$0xf]
    %v55 = vld [vmem:[#allocation2 + $0x8] sm:$0xf]
    %v56 = vld [vmem:[#allocation2 + $0xc] sm:$0xf]
    %v57 = vld [vmem:[#allocation2 + $0x10] sm:$0xf]
    %v58 = vld [vmem:[#allocation2 + $0x14] sm:$0xf]
    %v59 = vld [vmem:[#allocation2 + $0x18] sm:$0xf]
    %v60 = vld [vmem:[#allocation2 + $0x1c] sm:$0xf]
    %v61 = vld [vmem:[#allocation2 + $0x20] sm:$0xf]
    %v62 = vld [vmem:[#allocation2 + $0x24] sm:$0xf]
    %v63 = vld [vmem:[#allocation2 + $0x28] sm:$0xf]
    %v64 = vld [vmem:[#allocation2 + $0x2c] sm:$0xf]
    %v65 = vld [vmem:[#allocation2 + $0x30] sm:$0xf]
    %v66 = vld [vmem:[#allocation2 + $0x34] sm:$0xf]
    %v67 = vld [vmem:[#allocation2 + $0x38] sm:$0xf]
    %v68 = vld [vmem:[#allocation2 + $0x3c] sm:$0xf]
    %v69 = vld [vmem:[#allocation2 + $0x40] sm:$0xf]
    %v70 = vld [vmem:[#allocation2 + $0x44] sm:$0xf]
    %v71 = vld [vmem:[#allocation2 + $0x48] sm:$0xf]
    %v72 = vld [vmem:[#allocation2 + $0x4c] sm:$0xf]
    %v73 = vld [vmem:[#allocation2 + $0x50] sm:$0xf]
    %v74 = vld [vmem:[#allocation2 + $0x54] sm:$0xf]
    %v75 = vld [vmem:[#allocation2 + $0x58] sm:$0xf]
    %v76 = vld [vmem:[#allocation2 + $0x5c] sm:$0xf]
    %v77 = vld [vmem:[#allocation2 + $0x60] sm:$0xf]
    %v78 = vld [vmem:[#allocation2 + $0x64] sm:$0xf]
    %v79 = vld [vmem:[#allocation2 + $0x68] sm:$0xf]
    %v80 = vld [vmem:[#allocation2 + $0x6c] sm:$0xf]
    %v81 = vld [vmem:[#allocation2 + $0x70] sm:$0xf]
    %v82 = vld [vmem:[#allocation2 + $0x74] sm:$0xf]
    %v83 = vld [vmem:[#allocation2 + $0x78] sm:$0xf]
    %v84 = vld [vmem:[#allocation2 + $0x7c] sm:$0xf]
    %v85 = vld [vmem:[#allocation2 + $0x80] sm:$0xf]
    %v86 = vld [vmem:[#allocation2 + $0x84] sm:$0xf]
    %v87 = vld [vmem:[#allocation2 + $0x88] sm:$0xf]
    %v88 = vld [vmem:[#allocation2 + $0x8c] sm:$0xf]
    %v89 = vld [vmem:[#allocation2 + $0x90] sm:$0xf]
    %v90 = vld [vmem:[#allocation2 + $0x94] sm:$0xf]
    %v91 = vld [vmem:[#allocation2 + $0x98] sm:$0xf]
    %v92 = vld [vmem:[#allocation2 + $0x9c] sm:$0xf]
    %v93 = vld [vmem:[#allocation2 + $0xa0] sm:$0xf]
    %v94 = vld [vmem:[#allocation2 + $0xa4] sm:$0xf]
    %v95 = vld [vmem:[#allocation2 + $0xa8] sm:$0xf]
    %v96 = vld [vmem:[#allocation2 + $0xac] sm:$0xf]
    %v97 = vld [vmem:[#allocation2 + $0xb0] sm:$0xf]
    %v98 = vld [vmem:[#allocation2 + $0xb4] sm:$0xf]
    %v99 = vld [vmem:[#allocation2 + $0xb8] sm:$0xf]
    %v100 = vld [vmem:[#allocation2 + $0xbc] sm:$0xf]
    %v101 = vld [vmem:[#allocation2 + $0xc0] sm:$0xf]
    %v102 = vld [vmem:[#allocation2 + $0xc4] sm:$0xf]
    %v103 = vld [vmem:[#allocation2 + $0xc8] sm:$0xf]
    %v104 = vld [vmem:[#allocation2 + $0xcc] sm:$0xf]
    %v105 = vld [vmem:[#allocation2 + $0xd0] sm:$0xf]
    %v106 = vld [vmem:[#allocation2 + $0xd4] sm:$0xf]
    %v107 = vld [vmem:[#allocation2 + $0xd8] sm:$0xf]
    %v108 = vld [vmem:[#allocation2 + $0xdc] sm:$0xf]
    %v109 = vld [vmem:[#allocation2 + $0xe0] sm:$0xf]
    %v110 = vld [vmem:[#allocation2 + $0xe4] sm:$0xf]
    %v111 = vld [vmem:[#allocation2 + $0xe8] sm:$0xf]
    %v112 = vld [vmem:[#allocation2 + $0xec] sm:$0xf]
    %v113 = vld [vmem:[#allocation2 + $0xf0] sm:$0xf]
    %v114 = vld [vmem:[#allocation2 + $0xf4] sm:$0xf]
    %v115 = vld [vmem:[#allocation2 + $0xf8] sm:$0xf]
    %v116 = vld [vmem:[#allocation2 + $0xfc] sm:$0xf]
    %v117 = vld [vmem:[#allocation2 + $0x100] sm:$0xf]
    %v118 = vld [vmem:[#allocation2 + $0x104] sm:$0xf]
    %v119 = vld [vmem:[#allocation2 + $0x108] sm:$0xf]
    %v120 = vld [vmem:[#allocation2 + $0x10c] sm:$0xf]
    %v121 = vld [vmem:[#allocation2 + $0x110] sm:$0xf]
    %v122 = vld [vmem:[#allocation2 + $0x114] sm:$0xf]
    %v123 = vld [vmem:[#allocation2 + $0x118] sm:$0xf]
    %v124 = vld [vmem:[#allocation2 + $0x11c] sm:$0xf]
    %v125 = vld [vmem:[#allocation2 + $0x120] sm:$0xf]
    %v126 = vld [vmem:[#allocation2 + $0x124] sm:$0xf]
    %v127 = vld [vmem:[#allocation2 + $0x128] sm:$0xf]
    %v128 = vld [vmem:[#allocation2 + $0x12c] sm:$0xf]
    %v129 = vld [vmem:[#allocation2 + $0x130] sm:$0xf]
    %v130 = vld [vmem:[#allocation2 + $0x134] sm:$0xf]
    %v131 = vld [vmem:[#allocation2 + $0x138] sm:$0xf]
    %v132 = vld [vmem:[#allocation2 + $0x13c] sm:$0xf]
    %v133 = vld [vmem:[#allocation2 + $0x140] sm:$0xf]
    %v134 = vld [vmem:[#allocation2 + $0x144] sm:$0xf]
    %v135 = vld [vmem:[#allocation2 + $0x148] sm:$0xf]
    %v136 = vld [vmem:[#allocation2 + $0x14c] sm:$0xf]
    %v137 = vld [vmem:[#allocation2 + $0x150] sm:$0xf]
    %v138 = vld [vmem:[#allocation2 + $0x154] sm:$0xf]
    %v139 = vld [vmem:[#allocation2 + $0x158] sm:$0xf]
    %v140 = vld [vmem:[#allocation2 + $0x15c] sm:$0xf]
    %v141 = vld [vmem:[#allocation2 + $0x160] sm:$0xf]
    %v142 = vld [vmem:[#allocation2 + $0x164] sm:$0xf]
    %v143 = vld [vmem:[#allocation2 + $0x168] sm:$0xf]
    %v144 = vld [vmem:[#allocation2 + $0x16c] sm:$0xf]
    %v145 = vld [vmem:[#allocation2 + $0x170] sm:$0xf]
    %v146 = vld [vmem:[#allocation2 + $0x174] sm:$0xf]
    %v147 = vld [vmem:[#allocation2 + $0x178] sm:$0xf]
    %v148 = vld [vmem:[#allocation2 + $0x17c] sm:$0xf]
    %v149 = vld [vmem:[#allocation2 + $0x180] sm:$0xf]
    %v150 = vld [vmem:[#allocation2 + $0x184] sm:$0xf]
    %v151 = vld [vmem:[#allocation2 + $0x188] sm:$0xf]
    %v152 = vld [vmem:[#allocation2 + $0x18c] sm:$0xf]
    %v153 = vld [vmem:[#allocation2 + $0x190] sm:$0xf]
    %v154 = vld [vmem:[#allocation2 + $0x194] sm:$0xf]
    %v155 = vld [vmem:[#allocation2 + $0x198] sm:$0xf]
    %v156 = vld [vmem:[#allocation2 + $0x19c] sm:$0xf]
    %v157 = vld [vmem:[#allocation2 + $0x1a0] sm:$0xf]
    %v158 = vld [vmem:[#allocation2 + $0x1a4] sm:$0xf]
    %v159 = vld [vmem:[#allocation2 + $0x1a8] sm:$0xf]
    %v160 = vld [vmem:[#allocation2 + $0x1ac] sm:$0xf]
    %v161 = vld [vmem:[#allocation2 + $0x1b0] sm:$0xf]
    %v162 = vld [vmem:[#allocation2 + $0x1b4] sm:$0xf]
    %v163 = vld [vmem:[#allocation2 + $0x1b8] sm:$0xf]
    %v164 = vld [vmem:[#allocation2 + $0x1bc] sm:$0xf]
    %v165 = vld [vmem:[#allocation2 + $0x1c0] sm:$0xf]
    %v166 = vld [vmem:[#allocation2 + $0x1c4] sm:$0xf]
    %v167 = vld [vmem:[#allocation2 + $0x1c8] sm:$0xf]
    %v168 = vld [vmem:[#allocation2 + $0x1cc] sm:$0xf]
    %v169 = vld [vmem:[#allocation2 + $0x1d0] sm:$0xf]
    %v170 = vld [vmem:[#allocation2 + $0x1d4] sm:$0xf]
    %v171 = vld [vmem:[#allocation2 + $0x1d8] sm:$0xf]
    %v172 = vld [vmem:[#allocation2 + $0x1dc] sm:$0xf]
    %v173 = vld [vmem:[#allocation2 + $0x1e0] sm:$0xf]
    %v174 = vld [vmem:[#allocation2 + $0x1e4] sm:$0xf]
    %v175 = vld [vmem:[#allocation2 + $0x1e8] sm:$0xf]
    %v176 = vld [vmem:[#allocation2 + $0x1ec] sm:$0xf]
    %v177 = vld [vmem:[#allocation2 + $0x1f0] sm:$0xf]
    %v178 = vld [vmem:[#allocation2 + $0x1f4] sm:$0xf]
    %v179 = vld [vmem:[#allocation2 + $0x1f8] sm:$0xf]
    %v180 = vld [vmem:[#allocation2 + $0x1fc] sm:$0xf]
    %v181 = vld [vmem:[%s2] sm:$0x1]
    %v183 = vlaneseq
    %v184 = vshrl.u32 %v183, 7
    %v185 = vsub.s32 0, %v184
    %v186 = vrot.slane %v181, %v185
    %v316 = vunpack.c.l.b16 %v53
    %v317 = vunpack.c.l.b16 %v54
    %v318 = vunpack.c.l.b16 %v55
    %v319 = vunpack.c.l.b16 %v56
    %v320 = vunpack.c.l.b16 %v57
    %v321 = vunpack.c.l.b16 %v58
    %v322 = vunpack.c.l.b16 %v59
    %v323 = vunpack.c.l.b16 %v60
    %v324 = vunpack.c.l.b16 %v61
    %v325 = vunpack.c.l.b16 %v62
    %v326 = vunpack.c.l.b16 %v63
    %v327 = vunpack.c.l.b16 %v64
    %v328 = vunpack.c.l.b16 %v65
    %v329 = vunpack.c.l.b16 %v66
    %v330 = vunpack.c.l.b16 %v67
    %v331 = vunpack.c.l.b16 %v68
    %v332 = vunpack.c.l.b16 %v69
    %v333 = vunpack.c.l.b16 %v70
    %v334 = vunpack.c.l.b16 %v71
    %v335 = vunpack.c.l.b16 %v72
    %v336 = vunpack.c.l.b16 %v73
    %v337 = vunpack.c.l.b16 %v74
    %v338 = vunpack.c.l.b16 %v75
    %v339 = vunpack.c.l.b16 %v76
    %v340 = vunpack.c.l.b16 %v77
    %v341 = vunpack.c.l.b16 %v78
    %v342 = vunpack.c.l.b16 %v79
    %v343 = vunpack.c.l.b16 %v80
    %v344 = vunpack.c.l.b16 %v81
    %v345 = vunpack.c.l.b16 %v82
    %v346 = vunpack.c.l.b16 %v83
    %v347 = vunpack.c.l.b16 %v84
    %v348 = vunpack.c.l.b16 %v85
    %v349 = vunpack.c.l.b16 %v86
    %v350 = vunpack.c.l.b16 %v87
    %v351 = vunpack.c.l.b16 %v88
    %v352 = vunpack.c.l.b16 %v89
    %v353 = vunpack.c.l.b16 %v90
    %v354 = vunpack.c.l.b16 %v91
    %v355 = vunpack.c.l.b16 %v92
    %v356 = vunpack.c.l.b16 %v93
    %v357 = vunpack.c.l.b16 %v94
    %v358 = vunpack.c.l.b16 %v95
    %v359 = vunpack.c.l.b16 %v96
    %v360 = vunpack.c.l.b16 %v97
    %v361 = vunpack.c.l.b16 %v98
    %v362 = vunpack.c.l.b16 %v99
    %v363 = vunpack.c.l.b16 %v100
    %v364 = vunpack.c.l.b16 %v101
    %v365 = vunpack.c.l.b16 %v102
    %v366 = vunpack.c.l.b16 %v103
    %v367 = vunpack.c.l.b16 %v104
    %v368 = vunpack.c.l.b16 %v105
    %v369 = vunpack.c.l.b16 %v106
    %v370 = vunpack.c.l.b16 %v107
    %v371 = vunpack.c.l.b16 %v108
    %v372 = vunpack.c.l.b16 %v109
    %v373 = vunpack.c.l.b16 %v110
    %v374 = vunpack.c.l.b16 %v111
    %v375 = vunpack.c.l.b16 %v112
    %v376 = vunpack.c.l.b16 %v113
    %v377 = vunpack.c.l.b16 %v114
    %v378 = vunpack.c.l.b16 %v115
    %v379 = vunpack.c.l.b16 %v116
    %v380 = vunpack.c.l.b16 %v117
    %v381 = vunpack.c.l.b16 %v118
    %v382 = vunpack.c.l.b16 %v119
    %v383 = vunpack.c.l.b16 %v120
    %v384 = vunpack.c.l.b16 %v121
    %v385 = vunpack.c.l.b16 %v122
    %v386 = vunpack.c.l.b16 %v123
    %v387 = vunpack.c.l.b16 %v124
    %v388 = vunpack.c.l.b16 %v125
    %v389 = vunpack.c.l.b16 %v126
    %v390 = vunpack.c.l.b16 %v127
    %v391 = vunpack.c.l.b16 %v128
    %v392 = vunpack.c.l.b16 %v129
    %v393 = vunpack.c.l.b16 %v130
    %v394 = vunpack.c.l.b16 %v131
    %v395 = vunpack.c.l.b16 %v132
    %v396 = vunpack.c.l.b16 %v133
    %v397 = vunpack.c.l.b16 %v134
    %v398 = vunpack.c.l.b16 %v135
    %v399 = vunpack.c.l.b16 %v136
    %v400 = vunpack.c.l.b16 %v137
    %v401 = vunpack.c.l.b16 %v138
    %v402 = vunpack.c.l.b16 %v139
    %v403 = vunpack.c.l.b16 %v140
    %v404 = vunpack.c.l.b16 %v141
    %v405 = vunpack.c.l.b16 %v142
    %v406 = vunpack.c.l.b16 %v143
    %v407 = vunpack.c.l.b16 %v144
    %v408 = vunpack.c.l.b16 %v145
    %v409 = vunpack.c.l.b16 %v146
    %v410 = vunpack.c.l.b16 %v147
    %v411 = vunpack.c.l.b16 %v148
    %v412 = vunpack.c.l.b16 %v149
    %v413 = vunpack.c.l.b16 %v150
    %v414 = vunpack.c.l.b16 %v151
    %v415 = vunpack.c.l.b16 %v152
    %v416 = vunpack.c.l.b16 %v153
    %v417 = vunpack.c.l.b16 %v154
    %v418 = vunpack.c.l.b16 %v155
    %v419 = vunpack.c.l.b16 %v156
    %v420 = vunpack.c.l.b16 %v157
    %v421 = vunpack.c.l.b16 %v158
    %v422 = vunpack.c.l.b16 %v159
    %v423 = vunpack.c.l.b16 %v160
    %v424 = vunpack.c.l.b16 %v161
    %v425 = vunpack.c.l.b16 %v162
    %v426 = vunpack.c.l.b16 %v163
    %v427 = vunpack.c.l.b16 %v164
    %v428 = vunpack.c.l.b16 %v165
    %v429 = vunpack.c.l.b16 %v166
    %v430 = vunpack.c.l.b16 %v167
    %v431 = vunpack.c.l.b16 %v168
    %v432 = vunpack.c.l.b16 %v169
    %v433 = vunpack.c.l.b16 %v170
    %v434 = vunpack.c.l.b16 %v171
    %v435 = vunpack.c.l.b16 %v172
    %v436 = vunpack.c.l.b16 %v173
    %v437 = vunpack.c.l.b16 %v174
    %v438 = vunpack.c.l.b16 %v175
    %v439 = vunpack.c.l.b16 %v176
    %v440 = vunpack.c.l.b16 %v177
    %v441 = vunpack.c.l.b16 %v178
    %v442 = vunpack.c.l.b16 %v179
    %v443 = vunpack.c.l.b16 %v180
    %v444 = vpack.c.b16 %v317, %v316
    %v445 = vpack.c.b16 %v319, %v318
    %v446 = vpack.c.b16 %v321, %v320
    %v447 = vpack.c.b16 %v323, %v322
    %v448 = vpack.c.b16 %v325, %v324
    %v449 = vpack.c.b16 %v327, %v326
    %v450 = vpack.c.b16 %v329, %v328
    %v451 = vpack.c.b16 %v331, %v330
    %v452 = vpack.c.b16 %v333, %v332
    %v453 = vpack.c.b16 %v335, %v334
    %v454 = vpack.c.b16 %v337, %v336
    %v455 = vpack.c.b16 %v339, %v338
    %v456 = vpack.c.b16 %v341, %v340
    %v457 = vpack.c.b16 %v343, %v342
    %v458 = vpack.c.b16 %v345, %v344
    %v459 = vpack.c.b16 %v347, %v346
    %v460 = vpack.c.b16 %v349, %v348
    %v461 = vpack.c.b16 %v351, %v350
    %v462 = vpack.c.b16 %v353, %v352
    %v463 = vpack.c.b16 %v355, %v354
    %v464 = vpack.c.b16 %v357, %v356
    %v465 = vpack.c.b16 %v359, %v358
    %v466 = vpack.c.b16 %v361, %v360
    %v467 = vpack.c.b16 %v363, %v362
    %v468 = vpack.c.b16 %v365, %v364
    %v469 = vpack.c.b16 %v367, %v366
    %v470 = vpack.c.b16 %v369, %v368
    %v471 = vpack.c.b16 %v371, %v370
    %v472 = vpack.c.b16 %v373, %v372
    %v473 = vpack.c.b16 %v375, %v374
    %v474 = vpack.c.b16 %v377, %v376
    %v475 = vpack.c.b16 %v379, %v378
    %v476 = vpack.c.b16 %v381, %v380
    %v477 = vpack.c.b16 %v383, %v382
    %v478 = vpack.c.b16 %v385, %v384
    %v479 = vpack.c.b16 %v387, %v386
    %v480 = vpack.c.b16 %v389, %v388
    %v481 = vpack.c.b16 %v391, %v390
    %v482 = vpack.c.b16 %v393, %v392
    %v483 = vpack.c.b16 %v395, %v394
    %v484 = vpack.c.b16 %v397, %v396
    %v485 = vpack.c.b16 %v399, %v398
    %v486 = vpack.c.b16 %v401, %v400
    %v487 = vpack.c.b16 %v403, %v402
    %v488 = vpack.c.b16 %v405, %v404
    %v489 = vpack.c.b16 %v407, %v406
    %v490 = vpack.c.b16 %v409, %v408
    %v491 = vpack.c.b16 %v411, %v410
    %v492 = vpack.c.b16 %v413, %v412
    %v493 = vpack.c.b16 %v415, %v414
    %v494 = vpack.c.b16 %v417, %v416
    %v495 = vpack.c.b16 %v419, %v418
    %v496 = vpack.c.b16 %v421, %v420
    %v497 = vpack.c.b16 %v423, %v422
    %v498 = vpack.c.b16 %v425, %v424
    %v499 = vpack.c.b16 %v427, %v426
    %v500 = vpack.c.b16 %v429, %v428
    %v501 = vpack.c.b16 %v431, %v430
    %v502 = vpack.c.b16 %v433, %v432
    %v503 = vpack.c.b16 %v435, %v434
    %v504 = vpack.c.b16 %v437, %v436
    %v505 = vpack.c.b16 %v439, %v438
    %v506 = vpack.c.b16 %v441, %v440
    %v507 = vpack.c.b16 %v443, %v442
    %572 = vmatprep.subr.bf16.mxu0 0
    %573 = vmatpush1.bf16.msra.mxu0 %v444
    %574 = vmatprep.subr.bf16.mxu0 0
    %575 = vmatpush1.bf16.msra.mxu0 %v445
    %576 = vmatprep.subr.bf16.mxu0 0
    %577 = vmatpush1.bf16.msra.mxu0 %v446
    %578 = vmatprep.subr.bf16.mxu0 0
    %579 = vmatpush1.bf16.msra.mxu0 %v447
    %580 = vmatprep.subr.bf16.mxu0 0
    %581 = vmatpush1.bf16.msra.mxu0 %v448
    %582 = vmatprep.subr.bf16.mxu0 0
    %583 = vmatpush1.bf16.msra.mxu0 %v449
    %584 = vmatprep.subr.bf16.mxu0 0
    %585 = vmatpush1.bf16.msra.mxu0 %v450
    %586 = vmatprep.subr.bf16.mxu0 0
    %587 = vmatpush1.bf16.msra.mxu0 %v451
    %588 = vmatprep.subr.bf16.mxu0 0
    %589 = vmatpush1.bf16.msra.mxu0 %v452
    %590 = vmatprep.subr.bf16.mxu0 0
    %591 = vmatpush1.bf16.msra.mxu0 %v453
    %592 = vmatprep.subr.bf16.mxu0 0
    %593 = vmatpush1.bf16.msra.mxu0 %v454
    %594 = vmatprep.subr.bf16.mxu0 0
    %595 = vmatpush1.bf16.msra.mxu0 %v455
    %596 = vmatprep.subr.bf16.mxu0 0
    %597 = vmatpush1.bf16.msra.mxu0 %v456
    %598 = vmatprep.subr.bf16.mxu0 0
    %599 = vmatpush1.bf16.msra.mxu0 %v457
    %600 = vmatprep.subr.bf16.mxu0 0
    %601 = vmatpush1.bf16.msra.mxu0 %v458
    %602 = vmatprep.subr.bf16.mxu0 0
    %603 = vmatpush1.bf16.msra.mxu0 %v459
    %604 = vmatprep.mubr.bf16.mxu0 %v46
    %605 = vmatmul.mubr.bf16.gmra.mrb[0].mxu0 %v45
    %v606 = vpop.f32.mrb[0].mxu0
    %v607 = vadd.f32 %v186, %v606
    %v608 = vpop.f32.mrb[0].mxu0
    %v609 = vpop.f32.mrb[0].mxu0
    %v610 = vadd.f32 %v186, %v609
    %v611 = vpop.f32.mrb[0].mxu0
    %612 = vdwg.mxu0
    %613 = vmatprep.subr.bf16.mxu0 0
    %614 = vmatpush1.bf16.msra.mxu0 %v460
    %615 = vmatprep.subr.bf16.mxu0 0
    %616 = vmatpush1.bf16.msra.mxu0 %v461
    %617 = vmatprep.subr.bf16.mxu0 0
    %618 = vmatpush1.bf16.msra.mxu0 %v462
    %619 = vmatprep.subr.bf16.mxu0 0
    %620 = vmatpush1.bf16.msra.mxu0 %v463
    %621 = vmatprep.subr.bf16.mxu0 0
    %622 = vmatpush1.bf16.msra.mxu0 %v464
    %623 = vmatprep.subr.bf16.mxu0 0
    %624 = vmatpush1.bf16.msra.mxu0 %v465
    %625 = vmatprep.subr.bf16.mxu0 0
    %626 = vmatpush1.bf16.msra.mxu0 %v466
    %627 = vmatprep.subr.bf16.mxu0 0
    %628 = vmatpush1.bf16.msra.mxu0 %v467
    %629 = vmatprep.subr.bf16.mxu0 0
    %630 = vmatpush1.bf16.msra.mxu0 %v468
    %631 = vmatprep.subr.bf16.mxu0 0
    %632 = vmatpush1.bf16.msra.mxu0 %v469
    %633 = vmatprep.subr.bf16.mxu0 0
    %634 = vmatpush1.bf16.msra.mxu0 %v470
    %635 = vmatprep.subr.bf16.mxu0 0
    %636 = vmatpush1.bf16.msra.mxu0 %v471
    %637 = vmatprep.subr.bf16.mxu0 0
    %638 = vmatpush1.bf16.msra.mxu0 %v472
    %639 = vmatprep.subr.bf16.mxu0 0
    %640 = vmatpush1.bf16.msra.mxu0 %v473
    %641 = vmatprep.subr.bf16.mxu0 0
    %642 = vmatpush1.bf16.msra.mxu0 %v474
    %643 = vmatprep.subr.bf16.mxu0 0
    %644 = vmatpush1.bf16.msra.mxu0 %v475
    %645 = vmatprep.mubr.bf16.mxu0 %v48
    %646 = vmatmul.mubr.bf16.gmra.mrb[0].mxu0 %v47
    %v647 = vpop.f32.mrb[0].mxu0
    %v648 = vadd.f32 %v607, %v647
    %v649 = vpop.f32.mrb[0].mxu0
    %v650 = vpop.f32.mrb[0].mxu0
    %v651 = vadd.f32 %v610, %v650
    %v652 = vpop.f32.mrb[0].mxu0
    %653 = vdwg.mxu0
    %654 = vmatprep.subr.bf16.mxu0 0
    %655 = vmatpush1.bf16.msra.mxu0 %v476
    %656 = vmatprep.subr.bf16.mxu0 0
    %657 = vmatpush1.bf16.msra.mxu0 %v477
    %658 = vmatprep.subr.bf16.mxu0 0
    %659 = vmatpush1.bf16.msra.mxu0 %v478
    %660 = vmatprep.subr.bf16.mxu0 0
    %661 = vmatpush1.bf16.msra.mxu0 %v479
    %662 = vmatprep.subr.bf16.mxu0 0
    %663 = vmatpush1.bf16.msra.mxu0 %v480
    %664 = vmatprep.subr.bf16.mxu0 0
    %665 = vmatpush1.bf16.msra.mxu0 %v481
    %666 = vmatprep.subr.bf16.mxu0 0
    %667 = vmatpush1.bf16.msra.mxu0 %v482
    %668 = vmatprep.subr.bf16.mxu0 0
    %669 = vmatpush1.bf16.msra.mxu0 %v483
    %670 = vmatprep.subr.bf16.mxu0 0
    %671 = vmatpush1.bf16.msra.mxu0 %v484
    %672 = vmatprep.subr.bf16.mxu0 0
    %673 = vmatpush1.bf16.msra.mxu0 %v485
    %674 = vmatprep.subr.bf16.mxu0 0
    %675 = vmatpush1.bf16.msra.mxu0 %v486
    %676 = vmatprep.subr.bf16.mxu0 0
    %677 = vmatpush1.bf16.msra.mxu0 %v487
    %678 = vmatprep.subr.bf16.mxu0 0
    %679 = vmatpush1.bf16.msra.mxu0 %v488
    %680 = vmatprep.subr.bf16.mxu0 0
    %681 = vmatpush1.bf16.msra.mxu0 %v489
    %682 = vmatprep.subr.bf16.mxu0 0
    %683 = vmatpush1.bf16.msra.mxu0 %v490
    %684 = vmatprep.subr.bf16.mxu0 0
    %685 = vmatpush1.bf16.msra.mxu0 %v491
    %686 = vmatprep.mubr.bf16.mxu0 %v50
    %687 = vmatmul.mubr.bf16.gmra.mrb[0].mxu0 %v49
    %v688 = vpop.f32.mrb[0].mxu0
    %v689 = vadd.f32 %v648, %v688
    %v690 = vpop.f32.mrb[0].mxu0
    %v691 = vpop.f32.mrb[0].mxu0
    %v692 = vadd.f32 %v651, %v691
    %v693 = vpop.f32.mrb[0].mxu0
    %694 = vdwg.mxu0
    %695 = vmatprep.subr.bf16.mxu0 0
    %696 = vmatpush1.bf16.msra.mxu0 %v492
    %697 = vmatprep.subr.bf16.mxu0 0
    %698 = vmatpush1.bf16.msra.mxu0 %v493
    %699 = vmatprep.subr.bf16.mxu0 0
    %700 = vmatpush1.bf16.msra.mxu0 %v494
    %701 = vmatprep.subr.bf16.mxu0 0
    %702 = vmatpush1.bf16.msra.mxu0 %v495
    %703 = vmatprep.subr.bf16.mxu0 0
    %704 = vmatpush1.bf16.msra.mxu0 %v496
    %705 = vmatprep.subr.bf16.mxu0 0
    %706 = vmatpush1.bf16.msra.mxu0 %v497
    %707 = vmatprep.subr.bf16.mxu0 0
    %708 = vmatpush1.bf16.msra.mxu0 %v498
    %709 = vmatprep.subr.bf16.mxu0 0
    %710 = vmatpush1.bf16.msra.mxu0 %v499
    %711 = vmatprep.subr.bf16.mxu0 0
    %712 = vmatpush1.bf16.msra.mxu0 %v500
    %713 = vmatprep.subr.bf16.mxu0 0
    %714 = vmatpush1.bf16.msra.mxu0 %v501
    %715 = vmatprep.subr.bf16.mxu0 0
    %716 = vmatpush1.bf16.msra.mxu0 %v502
    %717 = vmatprep.subr.bf16.mxu0 0
    %718 = vmatpush1.bf16.msra.mxu0 %v503
    %719 = vmatprep.subr.bf16.mxu0 0
    %720 = vmatpush1.bf16.msra.mxu0 %v504
    %721 = vmatprep.subr.bf16.mxu0 0
    %722 = vmatpush1.bf16.msra.mxu0 %v505
    %723 = vmatprep.subr.bf16.mxu0 0
    %724 = vmatpush1.bf16.msra.mxu0 %v506
    %725 = vmatprep.subr.bf16.mxu0 0
    %726 = vmatpush1.bf16.msra.mxu0 %v507
    %727 = vmatprep.mubr.bf16.mxu0 %v52
    %728 = vmatmul.mubr.bf16.gmra.mrb[0].mxu0 %v51
    %v729 = vpop.f32.mrb[0].mxu0
    %v730 = vadd.f32 %v689, %v729
    %v731 = vpop.f32.mrb[0].mxu0
    %v732 = vpop.f32.mrb[0].mxu0
    %v733 = vadd.f32 %v692, %v732
    %v734 = vpop.f32.mrb[0].mxu0
    %735 = vdwg.mxu0
    %736 = vst [vmem:[%s3] sm:$0xff] %v730
    %737 = vst [vmem:[%s3 + $0x8] sm:$0xff] %v733
    // Predicated region
    $region18: #{_adapter_forward.1} parent=1 // pred_check
      _
    $region19: #{_adapter_forward.1} parent=1 // pred_check_branch
      %739 = sbr.rel (0) target = $region21
    $region20: #{_adapter_forward.1} parent=1 // pred_region
      _
    $region21: #{_adapter_forward.1} parent=1 // pred_fallthru
      _
    // Predicated region
    $region22: #{_adapter_forward.1} parent=1 // pred_check
      _
    $region23: #{_adapter_forward.1} parent=1 // pred_check_branch
      %741 = sbr.rel (0) target = $region25
    $region24: #{_adapter_forward.1} parent=1 // pred_region
      _
    $region25: #{_adapter_forward.1} parent=1 // pred_fallthru
      _
    %742 = vsyncpa [#allocation3], 1

</llo_original>
